<compile_context>
chip_gen: v5e
topology: v5e:2x2
jax: 0.10.0
libtpu: 0.0.40
codegen_flags: <defaults>
</compile_context>

<pallas_src>
import functools

import jax
import jax.numpy as jnp
from jax.experimental import pallas as pl
from jax.experimental.pallas import tpu as pltpu


def bahdanau_kernel(q_ref, k_ref, wa_w_ref, ua_w_ref, bias_ref, va_w_ref,
                    ctx_ref, wts_ref, *, mxu_dtype, ew_dtype):
    TB, S, H = k_ref.shape

    k = k_ref[...]                               # (TB,S,H) native dtype
    k_mx = k.astype(mxu_dtype)                   # in-kernel cast (no HBM pre-pass)
    q_mx = q_ref[...].astype(mxu_dtype)          # (TB,H)

    # Wa(query) + fused (wa_b + ua_b): one (TB,H)@(H,H) MXU matmul, f32 acc.
    wa_q = jnp.dot(q_mx, wa_w_ref[...],
                   preferred_element_type=jnp.float32) + bias_ref[...]       # (TB,H) f32

    # Ua(keys): flatten batch*seq -> one big (TB*S,H)@(H,H) MXU matmul.
    # (S should be a multiple of 8 so this reshape is a free layout merge.)
    ua_k = jnp.dot(k_mx.reshape(TB * S, H), ua_w_ref[...],
                   preferred_element_type=jnp.float32).reshape(TB, S, H)     # (TB,S,H) f32

    # tanh(Wa(q)+Ua(k)) and the Va projection in the elementwise dtype
    # (bf16 on v6e/v7x -> packed VPU/EUP; f32 on v5e), f32 accumulation.
    e = jnp.tanh((wa_q[:, None, :] + ua_k).astype(ew_dtype))                 # (TB,S,H)
    scores = jnp.sum(e * va_w_ref[...].astype(ew_dtype),
                     axis=-1, dtype=jnp.float32)                             # (TB,S) f32
    # NOTE: Va's bias is omitted -- softmax is shift-invariant.

    # Softmax over the sequence (lane) axis; denominator via EUP approx recip.
    m = jnp.max(scores, axis=-1, keepdims=True)
    p = jnp.exp(scores - m)
    w = p * pl.reciprocal(jnp.sum(p, axis=-1, keepdims=True), approx=True)   # (TB,S) f32

    # context[b] = sum_s w[b,s] * keys[b,s,:]  (VPU mul + sublane reduce).
    ctx = jnp.sum(w[:, :, None].astype(ew_dtype) * k.astype(ew_dtype),
                  axis=1, dtype=jnp.float32)                                 # (TB,H) f32

    ctx_ref[...] = ctx.astype(ctx_ref.dtype)
    wts_ref[...] = w.astype(wts_ref.dtype)


def _vmem_capacity_bytes():
    try:
        cap = int(pltpu.get_tpu_info().vmem_capacity_bytes)
        if cap > 0:
            return cap
    except Exception:
        pass
    return 64 * 1024 * 1024          # conservative (v7x-sized) fallback


def _default_elementwise_dtype():
    """bf16 elementwise math on generations with bf16 VPU/EUP (v6e, v7x)."""
    try:
        kind = jax.devices()[0].device_kind.lower()
    except Exception:
        return jnp.float32
    if ("v6" in kind) or ("v7" in kind) or ("7x" in kind):
        return jnp.bfloat16
    return jnp.float32


def _pick_block_b(B, S, H, key_isz, mxu_isz, ew_isz, budget_bytes):
    """Batch tile TB against a VMEM budget, keeping >=4 even grid steps."""
    # Live bytes per batch row per grid step: keys tile (double-buffered),
    # in-kernel MXU/elementwise casts, ua_k / e / w*k intermediates, f32
    # accumulation headroom, plus the (double-buffered) per-row outputs.
    per_row = (S * H * (2 * key_isz + max(mxu_isz, ew_isz) + 3 * ew_isz + 4)
               + 8 * (H + S))
    # Grid-invariant residency: Wa^T/Ua^T weight buffers + bias + Va weight.
    resident = 4 * H * H * mxu_isz + 16 * H
    avail = max(budget_bytes - resident, per_row)
    tb_mem = max(int(avail // per_row), 1)

    # Enough evenly sized grid steps so the keys DMA overlaps compute and the
    # v7x megacore gets >=2 steps per TensorCore.
    if B >= 64:
        tb_steps = B // 8
    elif B >= 32:
        tb_steps = B // 4
    elif B >= 16:
        tb_steps = B // 2
    else:
        tb_steps = B

    tb = max(min(tb_mem, tb_steps, 512, B), 1)
    if tb >= B:
        return B                                   # whole (small) batch at once
    tb = max((tb // 8) * 8, 8)                     # sublane-aligned tile
    for cand in range(tb, 7, -8):                  # prefer even, full steps
        if B % cand == 0:
            return cand
    return tb                                      # ragged last block is OK


def _const_spec(shape, single_buffer):
    """BlockSpec for grid-invariant operands; single-buffered when supported."""
    index_map = lambda b: (0,) * len(shape)
    if single_buffer and hasattr(pl, "Buffered"):
        try:
            return pl.BlockSpec(shape, index_map, pipeline_mode=pl.Buffered(1))
        except TypeError:
            pass
    return pl.BlockSpec(shape, index_map)


def bahdanau_attention(query, keys, wa_w, wa_b, ua_w, ua_b, va_w, va_b=None, *,
                       matmul_dtype=jnp.bfloat16, elementwise_dtype=None,
                       block_b=None):
    """query: (B,1,H), keys: (B,S,H). Weights in PyTorch nn.Linear layout
    (out, in); transposed here so the kernel computes x @ W.
    Returns context (B,1,H) and attention weights (B,1,S), both f32."""
    del va_b  # softmax is shift-invariant: Va's bias cannot change the output.
    B, Q, H = query.shape
    assert Q == 1
    Bk, S, Hk = keys.shape
    assert Bk == B and Hk == H

    if elementwise_dtype is None:
        if jnp.dtype(matmul_dtype) == jnp.dtype(jnp.float32):
            elementwise_dtype = jnp.float32        # full-precision path
        else:
            elementwise_dtype = _default_elementwise_dtype()

    vmem_cap = _vmem_capacity_bytes()
    key_isz = jnp.dtype(keys.dtype).itemsize
    mxu_isz = jnp.dtype(matmul_dtype).itemsize
    ew_isz = jnp.dtype(elementwise_dtype).itemsize
    TB = (block_b if block_b is not None
          else _pick_block_b(B, S, H, key_isz, mxu_isz, ew_isz,
                             budget_bytes=int(vmem_cap * 0.45)))

    # Keys / query are DMA'd in their native dtype and cast next to the MXU
    # inside the kernel (no wrapper-side astype / pad passes over keys).
    q2d = query.reshape(B, H)
    wa_w_t = wa_w.T.astype(matmul_dtype)                       # (H, H)
    ua_w_t = ua_w.T.astype(matmul_dtype)                       # (H, H)
    bias = (wa_b + ua_b).reshape(1, H).astype(jnp.float32)     # fused biases
    va_w_2d = va_w.reshape(1, H).astype(jnp.float32)           # Va weight

    grid = (pl.cdiv(B, TB),)
    kernel = functools.partial(bahdanau_kernel, mxu_dtype=matmul_dtype,
                               ew_dtype=elementwise_dtype)

    def _call(single_buffer_weights):
        return pl.pallas_call(
            kernel,
            out_shape=(
                jax.ShapeDtypeStruct((B, H), jnp.float32),
                jax.ShapeDtypeStruct((B, S), jnp.float32),
            ),
            grid_spec=pltpu.PrefetchScalarGridSpec(
                num_scalar_prefetch=0,
                grid=grid,
                in_specs=[
                    pl.BlockSpec((TB, H), lambda b: (b, 0)),        # query rows
                    pl.BlockSpec((TB, S, H), lambda b: (b, 0, 0)),  # keys tile
                    _const_spec((H, H), single_buffer_weights),     # Wa^T
                    _const_spec((H, H), single_buffer_weights),     # Ua^T
                    _const_spec((1, H), single_buffer_weights),     # fused bias
                    _const_spec((1, H), single_buffer_weights),     # Va weight
                ],
                out_specs=[
                    pl.BlockSpec((TB, H), lambda b: (b, 0)),        # context
                    pl.BlockSpec((TB, S), lambda b: (b, 0)),        # weights
                ],
            ),
            compiler_params=pltpu.CompilerParams(
                dimension_semantics=("parallel",),
                vmem_limit_bytes=int(vmem_cap * 0.75),
            ),
        )(q2d, keys, wa_w_t, ua_w_t, bias, va_w_2d)

    try:
        context, weights = _call(True)
    except Exception:
        # pl.Buffered(1) on the constant operands is a pure VMEM optimisation;
        # retry with default double-buffering if this jax build rejects it.
        context, weights = _call(False)

    return context.reshape(B, 1, H), weights.reshape(B, 1, S)


def reference(query, keys, wa_w, wa_b, ua_w, ua_b, va_w, va_b):
    # Pure-JAX reference mirroring the PyTorch forward exactly.
    wa_q = query @ wa_w.T + wa_b                      # (B,1,H)
    ua_k = keys @ ua_w.T + ua_b                       # (B,S,H)
    scores = jnp.tanh(wa_q + ua_k) @ va_w.T + va_b    # (B,S,1)
    scores = jnp.transpose(scores, (0, 2, 1))         # (B,1,S)
    weights = jax.nn.softmax(scores, axis=-1)
    context = weights @ keys                          # (B,1,H)
    return context, weights


if __name__ == "__main__":
    B, S, H = 2, 8, 32
    key = jax.random.PRNGKey(0)
    k_q, k_k, k1, k2, k3, k4, k5, k6 = jax.random.split(key, 8)

    query = jax.random.normal(k_q, (B, 1, H), dtype=jnp.float32)
    keys = jax.random.normal(k_k, (B, S, H), dtype=jnp.float32)

    # Deterministic parameter init (PyTorch nn.Linear shapes: (out, in) / (out,))
    scale = 1.0 / jnp.sqrt(H)
    wa_w = jax.random.uniform(k1, (H, H), jnp.float32, -scale, scale)
    wa_b = jax.random.uniform(k2, (H,), jnp.float32, -scale, scale)
    ua_w = jax.random.uniform(k3, (H, H), jnp.float32, -scale, scale)
    ua_b = jax.random.uniform(k4, (H,), jnp.float32, -scale, scale)
    va_w = jax.random.uniform(k5, (1, H), jnp.float32, -scale, scale)
    va_b = jax.random.uniform(k6, (1,), jnp.float32, -scale, scale)

    ctx_gold, wts_gold = reference(query, keys, wa_w, wa_b, ua_w, ua_b, va_w, va_b)

    # Full-precision path (f32 MXU + f32 elementwise).
    ctx32, wts32 = bahdanau_attention(query, keys, wa_w, wa_b, ua_w, ua_b,
                                      va_w, va_b, matmul_dtype=jnp.float32)
    jax.block_until_ready((ctx32, wts32))
    assert ctx32.shape == (B, 1, H) and wts32.shape == (B, 1, S)
    assert jnp.allclose(ctx32, ctx_gold, atol=1e-3, rtol=1e-3)
    assert jnp.allclose(wts32, wts_gold, atol=1e-3, rtol=1e-3)

    # Default path: bf16 MXU; elementwise dtype auto-picked per generation.
    ctxbf, wtsbf = bahdanau_attention(query, keys, wa_w, wa_b, ua_w, ua_b,
                                      va_w, va_b)
    jax.block_until_ready((ctxbf, wtsbf))
    assert ctxbf.shape == (B, 1, H) and wtsbf.shape == (B, 1, S)
    assert jnp.allclose(ctxbf, ctx_gold, atol=3e-2, rtol=3e-2)
    assert jnp.allclose(wtsbf, wts_gold, atol=3e-2, rtol=3e-2)

    print("KERNEL_OK")
</pallas_src>

<mosaic_0001>
module attributes {stable_mosaic.version = 11 : i64} {
  func.func @bahdanau_kernel(%arg0: i32, %arg1: memref<2x32xf32, #tpu.memory_space<vmem>>, %arg2: memref<2x8x32xf32, #tpu.memory_space<vmem>>, %arg3: memref<32x32xf32, #tpu.memory_space<vmem>>, %arg4: memref<32x32xf32, #tpu.memory_space<vmem>>, %arg5: memref<1x32xf32, #tpu.memory_space<vmem>>, %arg6: memref<1x32xf32, #tpu.memory_space<vmem>>, %arg7: memref<2x32xf32, #tpu.memory_space<vmem>>, %arg8: memref<2x8xf32, #tpu.memory_space<vmem>>) attributes {dimension_semantics = [#tpu.dimension_semantics<parallel>], iteration_bounds = array<i64: 1>, scalar_prefetch = 0 : i64, scratch_operands = 0 : i64, tpu.core_type = #tpu.core_type<tc>, window_params = [{transform_indices = @transform_0, window_bounds = array<i64: 2, 32>}, {transform_indices = @transform_1, window_bounds = array<i64: 2, 8, 32>}, {pipeline_mode = #tpu.pipeline_mode<synchronous>, transform_indices = @transform_2, window_bounds = array<i64: 32, 32>}, {pipeline_mode = #tpu.pipeline_mode<synchronous>, transform_indices = @transform_3, window_bounds = array<i64: 32, 32>}, {pipeline_mode = #tpu.pipeline_mode<synchronous>, transform_indices = @transform_4, window_bounds = array<i64: 1, 32>}, {pipeline_mode = #tpu.pipeline_mode<synchronous>, transform_indices = @transform_5, window_bounds = array<i64: 1, 32>}, {transform_indices = @transform_6, window_bounds = array<i64: 2, 32>}, {transform_indices = @transform_7, window_bounds = array<i64: 2, 8>}]} {
    %c0 = arith.constant 0 : index
    %c0_0 = arith.constant 0 : index
    %c0_1 = arith.constant 0 : index
    %0 = vector.load %arg2[%c0, %c0_0, %c0_1] : memref<2x8x32xf32, #tpu.memory_space<vmem>>, vector<2x8x32xf32>
    %c0_2 = arith.constant 0 : index
    %c0_3 = arith.constant 0 : index
    %1 = vector.load %arg1[%c0_2, %c0_3] : memref<2x32xf32, #tpu.memory_space<vmem>>, vector<2x32xf32>
    %c0_4 = arith.constant 0 : index
    %c0_5 = arith.constant 0 : index
    %2 = vector.load %arg3[%c0_4, %c0_5] : memref<32x32xf32, #tpu.memory_space<vmem>>, vector<32x32xf32>
    %cst = arith.constant dense<0.000000e+00> : vector<2x32xf32>
    %3 = tpu.matmul %1, %2, %cst {dimension_numbers = #tpu.dot_dimension_numbers<[1], [0], [0], [1], [0, 0, 1, 1], [], []>} : vector<2x32xf32>, vector<32x32xf32>, vector<2x32xf32> -> vector<2x32xf32>
    %c0_6 = arith.constant 0 : index
    %c0_7 = arith.constant 0 : index
    %4 = vector.load %arg5[%c0_6, %c0_7] : memref<1x32xf32, #tpu.memory_space<vmem>>, vector<1x32xf32>
    %5 = vector.broadcast %4 : vector<1x32xf32> to vector<2x32xf32>
    %6 = arith.addf %3, %5 : vector<2x32xf32>
    %7 = vector.shape_cast %0 : vector<2x8x32xf32> to vector<16x32xf32>
    %c0_8 = arith.constant 0 : index
    %c0_9 = arith.constant 0 : index
    %8 = vector.load %arg4[%c0_8, %c0_9] : memref<32x32xf32, #tpu.memory_space<vmem>>, vector<32x32xf32>
    %cst_10 = arith.constant dense<0.000000e+00> : vector<16x32xf32>
    %9 = tpu.matmul %7, %8, %cst_10 {dimension_numbers = #tpu.dot_dimension_numbers<[1], [0], [0], [1], [0, 0, 1, 1], [], []>} : vector<16x32xf32>, vector<32x32xf32>, vector<16x32xf32> -> vector<16x32xf32>
    %10 = vector.shape_cast %9 : vector<16x32xf32> to vector<2x8x32xf32>
    %11 = vector.shape_cast %6 : vector<2x32xf32> to vector<2x1x32xf32>
    %12 = vector.broadcast %11 : vector<2x1x32xf32> to vector<2x8x32xf32>
    %13 = arith.addf %12, %10 : vector<2x8x32xf32>
    %14 = math.tanh %13 : vector<2x8x32xf32>
    %c0_11 = arith.constant 0 : index
    %c0_12 = arith.constant 0 : index
    %15 = vector.load %arg6[%c0_11, %c0_12] : memref<1x32xf32, #tpu.memory_space<vmem>>, vector<1x32xf32>
    %16 = vector.shape_cast %15 : vector<1x32xf32> to vector<1x1x32xf32>
    %17 = vector.broadcast %16 : vector<1x1x32xf32> to vector<2x8x32xf32>
    %18 = arith.mulf %14, %17 : vector<2x8x32xf32>
    %cst_13 = arith.constant dense<0.000000e+00> : vector<2x8xf32>
    %19 = vector.multi_reduction <add>, %18, %cst_13 [2] : vector<2x8x32xf32> to vector<2x8xf32>
    %cst_14 = arith.constant dense<0xFF800000> : vector<2xf32>
    %20 = vector.multi_reduction <maximumf>, %19, %cst_14 [1] : vector<2x8xf32> to vector<2xf32>
    %21 = vector.shape_cast %20 : vector<2xf32> to vector<2x1xf32>
    %22 = vector.broadcast %21 : vector<2x1xf32> to vector<2x8xf32>
    %23 = arith.subf %19, %22 : vector<2x8xf32>
    %24 = math.exp %23 : vector<2x8xf32>
    %cst_15 = arith.constant dense<0.000000e+00> : vector<2xf32>
    %25 = vector.multi_reduction <add>, %24, %cst_15 [1] : vector<2x8xf32> to vector<2xf32>
    %26 = vector.shape_cast %25 : vector<2xf32> to vector<2x1xf32>
    %27 = tpu.reciprocal %26 {approx = true} : vector<2x1xf32> -> vector<2x1xf32>
    %28 = vector.broadcast %27 : vector<2x1xf32> to vector<2x8xf32>
    %29 = arith.mulf %24, %28 : vector<2x8xf32>
    %30 = vector.shape_cast %29 : vector<2x8xf32> to vector<2x8x1xf32>
    %31 = vector.broadcast %30 : vector<2x8x1xf32> to vector<2x8x32xf32>
    %32 = arith.mulf %31, %0 : vector<2x8x32xf32>
    %cst_16 = arith.constant dense<0.000000e+00> : vector<2x32xf32>
    %33 = vector.multi_reduction <add>, %32, %cst_16 [1] : vector<2x8x32xf32> to vector<2x32xf32>
    %c0_17 = arith.constant 0 : index
    %c0_18 = arith.constant 0 : index
    %34 = vector.load %arg7[%c0_17, %c0_18] : memref<2x32xf32, #tpu.memory_space<vmem>>, vector<2x32xf32>
    tpu.vector_store %arg7[%c0_17, %c0_18], %33 {strides = array<i32>} : memref<2x32xf32, #tpu.memory_space<vmem>>, vector<2x32xf32>,
    %c0_19 = arith.constant 0 : index
    %c0_20 = arith.constant 0 : index
    %35 = vector.load %arg8[%c0_19, %c0_20] : memref<2x8xf32, #tpu.memory_space<vmem>>, vector<2x8xf32>
    tpu.vector_store %arg8[%c0_19, %c0_20], %29 {strides = array<i32>} : memref<2x8xf32, #tpu.memory_space<vmem>>, vector<2x8xf32>,
    return
  }
  func.func @transform_0(%arg0: i32) -> (i32, i32) {
    %c0_i32 = arith.constant 0 : i32
    %c0_i32_0 = arith.constant 0 : i32
    return %arg0, %c0_i32 : i32, i32
  }
  func.func @transform_1(%arg0: i32) -> (i32, i32, i32) {
    %c0_i32 = arith.constant 0 : i32
    %c0_i32_0 = arith.constant 0 : i32
    %c0_i32_1 = arith.constant 0 : i32
    return %arg0, %c0_i32, %c0_i32_0 : i32, i32, i32
  }
  func.func @transform_2(%arg0: i32) -> (i32, i32) {
    %c0_i32 = arith.constant 0 : i32
    %c0_i32_0 = arith.constant 0 : i32
    %c0_i32_1 = arith.constant 0 : i32
    return %c0_i32, %c0_i32_0 : i32, i32
  }
  func.func @transform_3(%arg0: i32) -> (i32, i32) {
    %c0_i32 = arith.constant 0 : i32
    %c0_i32_0 = arith.constant 0 : i32
    %c0_i32_1 = arith.constant 0 : i32
    return %c0_i32, %c0_i32_0 : i32, i32
  }
  func.func @transform_4(%arg0: i32) -> (i32, i32) {
    %c0_i32 = arith.constant 0 : i32
    %c0_i32_0 = arith.constant 0 : i32
    %c0_i32_1 = arith.constant 0 : i32
    return %c0_i32, %c0_i32_0 : i32, i32
  }
  func.func @transform_5(%arg0: i32) -> (i32, i32) {
    %c0_i32 = arith.constant 0 : i32
    %c0_i32_0 = arith.constant 0 : i32
    %c0_i32_1 = arith.constant 0 : i32
    return %c0_i32, %c0_i32_0 : i32, i32
  }
  func.func @transform_6(%arg0: i32) -> (i32, i32) {
    %c0_i32 = arith.constant 0 : i32
    %c0_i32_0 = arith.constant 0 : i32
    return %arg0, %c0_i32 : i32, i32
  }
  func.func @transform_7(%arg0: i32) -> (i32, i32) {
    %c0_i32 = arith.constant 0 : i32
    %c0_i32_0 = arith.constant 0 : i32
    return %arg0, %c0_i32 : i32, i32
  }
}

module attributes {stable_mosaic.version = 11 : i64} {
  func.func @bahdanau_kernel(%arg0: i32, %arg1: memref<2x32xf32, #tpu.memory_space<vmem>>, %arg2: memref<2x8x32xf32, #tpu.memory_space<vmem>>, %arg3: memref<32x32xf32, #tpu.memory_space<vmem>>, %arg4: memref<32x32xf32, #tpu.memory_space<vmem>>, %arg5: memref<1x32xf32, #tpu.memory_space<vmem>>, %arg6: memref<1x32xf32, #tpu.memory_space<vmem>>, %arg7: memref<2x32xf32, #tpu.memory_space<vmem>>, %arg8: memref<2x8xf32, #tpu.memory_space<vmem>>) attributes {dimension_semantics = [#tpu.dimension_semantics<parallel>], iteration_bounds = array<i64: 1>, scalar_prefetch = 0 : i64, scratch_operands = 0 : i64, tpu.core_type = #tpu.core_type<tc>, window_params = [{transform_indices = @transform_0, window_bounds = array<i64: 2, 32>}, {transform_indices = @transform_1, window_bounds = array<i64: 2, 8, 32>}, {pipeline_mode = #tpu.pipeline_mode<synchronous>, transform_indices = @transform_2, window_bounds = array<i64: 32, 32>}, {pipeline_mode = #tpu.pipeline_mode<synchronous>, transform_indices = @transform_3, window_bounds = array<i64: 32, 32>}, {pipeline_mode = #tpu.pipeline_mode<synchronous>, transform_indices = @transform_4, window_bounds = array<i64: 1, 32>}, {pipeline_mode = #tpu.pipeline_mode<synchronous>, transform_indices = @transform_5, window_bounds = array<i64: 1, 32>}, {transform_indices = @transform_6, window_bounds = array<i64: 2, 32>}, {transform_indices = @transform_7, window_bounds = array<i64: 2, 8>}]} {
    %c0 = arith.constant 0 : index
    %c0_0 = arith.constant 0 : index
    %c0_1 = arith.constant 0 : index
    %0 = vector.load %arg2[%c0, %c0_0, %c0_1] : memref<2x8x32xf32, #tpu.memory_space<vmem>>, vector<2x8x32xf32>
    %c0_2 = arith.constant 0 : index
    %c0_3 = arith.constant 0 : index
    %1 = vector.load %arg1[%c0_2, %c0_3] : memref<2x32xf32, #tpu.memory_space<vmem>>, vector<2x32xf32>
    %c0_4 = arith.constant 0 : index
    %c0_5 = arith.constant 0 : index
    %2 = vector.load %arg3[%c0_4, %c0_5] : memref<32x32xf32, #tpu.memory_space<vmem>>, vector<32x32xf32>
    %cst = arith.constant dense<0.000000e+00> : vector<2x32xf32>
    %3 = tpu.matmul %1, %2, %cst {dimension_numbers = #tpu.dot_dimension_numbers<[1], [0], [0], [1], [0, 0, 1, 1], [], []>} : vector<2x32xf32>, vector<32x32xf32>, vector<2x32xf32> -> vector<2x32xf32>
    %c0_6 = arith.constant 0 : index
    %c0_7 = arith.constant 0 : index
    %4 = vector.load %arg5[%c0_6, %c0_7] : memref<1x32xf32, #tpu.memory_space<vmem>>, vector<1x32xf32>
    %5 = vector.broadcast %4 : vector<1x32xf32> to vector<2x32xf32>
    %6 = arith.addf %3, %5 : vector<2x32xf32>
    %7 = vector.shape_cast %0 : vector<2x8x32xf32> to vector<16x32xf32>
    %c0_8 = arith.constant 0 : index
    %c0_9 = arith.constant 0 : index
    %8 = vector.load %arg4[%c0_8, %c0_9] : memref<32x32xf32, #tpu.memory_space<vmem>>, vector<32x32xf32>
    %cst_10 = arith.constant dense<0.000000e+00> : vector<16x32xf32>
    %9 = tpu.matmul %7, %8, %cst_10 {dimension_numbers = #tpu.dot_dimension_numbers<[1], [0], [0], [1], [0, 0, 1, 1], [], []>} : vector<16x32xf32>, vector<32x32xf32>, vector<16x32xf32> -> vector<16x32xf32>
    %10 = vector.shape_cast %9 : vector<16x32xf32> to vector<2x8x32xf32>
    %11 = vector.shape_cast %6 : vector<2x32xf32> to vector<2x1x32xf32>
    %12 = vector.broadcast %11 : vector<2x1x32xf32> to vector<2x8x32xf32>
    %13 = arith.addf %12, %10 : vector<2x8x32xf32>
    %14 = math.tanh %13 : vector<2x8x32xf32>
    %c0_11 = arith.constant 0 : index
    %c0_12 = arith.constant 0 : index
    %15 = vector.load %arg6[%c0_11, %c0_12] : memref<1x32xf32, #tpu.memory_space<vmem>>, vector<1x32xf32>
    %16 = vector.shape_cast %15 : vector<1x32xf32> to vector<1x1x32xf32>
    %17 = vector.broadcast %16 : vector<1x1x32xf32> to vector<2x8x32xf32>
    %18 = arith.mulf %14, %17 : vector<2x8x32xf32>
    %cst_13 = arith.constant dense<0.000000e+00> : vector<2x8xf32>
    %19 = vector.multi_reduction <add>, %18, %cst_13 [2] : vector<2x8x32xf32> to vector<2x8xf32>
    %cst_14 = arith.constant dense<0xFF800000> : vector<2xf32>
    %20 = vector.multi_reduction <maximumf>, %19, %cst_14 [1] : vector<2x8xf32> to vector<2xf32>
    %21 = vector.shape_cast %20 : vector<2xf32> to vector<2x1xf32>
    %22 = vector.broadcast %21 : vector<2x1xf32> to vector<2x8xf32>
    %23 = arith.subf %19, %22 : vector<2x8xf32>
    %24 = math.exp %23 : vector<2x8xf32>
    %cst_15 = arith.constant dense<0.000000e+00> : vector<2xf32>
    %25 = vector.multi_reduction <add>, %24, %cst_15 [1] : vector<2x8xf32> to vector<2xf32>
    %26 = vector.shape_cast %25 : vector<2xf32> to vector<2x1xf32>
    %27 = tpu.reciprocal %26 {approx = true} : vector<2x1xf32> -> vector<2x1xf32>
    %28 = vector.broadcast %27 : vector<2x1xf32> to vector<2x8xf32>
    %29 = arith.mulf %24, %28 : vector<2x8xf32>
    %30 = vector.shape_cast %29 : vector<2x8xf32> to vector<2x8x1xf32>
    %31 = vector.broadcast %30 : vector<2x8x1xf32> to vector<2x8x32xf32>
    %32 = arith.mulf %31, %0 : vector<2x8x32xf32>
    %cst_16 = arith.constant dense<0.000000e+00> : vector<2x32xf32>
    %33 = vector.multi_reduction <add>, %32, %cst_16 [1] : vector<2x8x32xf32> to vector<2x32xf32>
    %c0_17 = arith.constant 0 : index
    %c0_18 = arith.constant 0 : index
    %34 = vector.load %arg7[%c0_17, %c0_18] : memref<2x32xf32, #tpu.memory_space<vmem>>, vector<2x32xf32>
    tpu.vector_store %arg7[%c0_17, %c0_18], %33 {strides = array<i32>} : memref<2x32xf32, #tpu.memory_space<vmem>>, vector<2x32xf32>,
    %c0_19 = arith.constant 0 : index
    %c0_20 = arith.constant 0 : index
    %35 = vector.load %arg8[%c0_19, %c0_20] : memref<2x8xf32, #tpu.memory_space<vmem>>, vector<2x8xf32>
    tpu.vector_store %arg8[%c0_19, %c0_20], %29 {strides = array<i32>} : memref<2x8xf32, #tpu.memory_space<vmem>>, vector<2x8xf32>,
    return
  }
  func.func @transform_0(%arg0: i32) -> (i32, i32) {
    %c0_i32 = arith.constant 0 : i32
    %c0_i32_0 = arith.constant 0 : i32
    return %arg0, %c0_i32 : i32, i32
  }
  func.func @transform_1(%arg0: i32) -> (i32, i32, i32) {
    %c0_i32 = arith.constant 0 : i32
    %c0_i32_0 = arith.constant 0 : i32
    %c0_i32_1 = arith.constant 0 : i32
    return %arg0, %c0_i32, %c0_i32_0 : i32, i32, i32
  }
  func.func @transform_2(%arg0: i32) -> (i32, i32) {
    %c0_i32 = arith.constant 0 : i32
    %c0_i32_0 = arith.constant 0 : i32
    %c0_i32_1 = arith.constant 0 : i32
    return %c0_i32, %c0_i32_0 : i32, i32
  }
  func.func @transform_3(%arg0: i32) -> (i32, i32) {
    %c0_i32 = arith.constant 0 : i32
    %c0_i32_0 = arith.constant 0 : i32
    %c0_i32_1 = arith.constant 0 : i32
    return %c0_i32, %c0_i32_0 : i32, i32
  }
  func.func @transform_4(%arg0: i32) -> (i32, i32) {
    %c0_i32 = arith.constant 0 : i32
    %c0_i32_0 = arith.constant 0 : i32
    %c0_i32_1 = arith.constant 0 : i32
    return %c0_i32, %c0_i32_0 : i32, i32
  }
  func.func @transform_5(%arg0: i32) -> (i32, i32) {
    %c0_i32 = arith.constant 0 : i32
    %c0_i32_0 = arith.constant 0 : i32
    %c0_i32_1 = arith.constant 0 : i32
    return %c0_i32, %c0_i32_0 : i32, i32
  }
  func.func @transform_6(%arg0: i32) -> (i32, i32) {
    %c0_i32 = arith.constant 0 : i32
    %c0_i32_0 = arith.constant 0 : i32
    return %arg0, %c0_i32 : i32, i32
  }
  func.func @transform_7(%arg0: i32) -> (i32, i32) {
    %c0_i32 = arith.constant 0 : i32
    %c0_i32_0 = arith.constant 0 : i32
    return %arg0, %c0_i32 : i32, i32
  }
}

</mosaic_0001>

<llo_original>
// kernel: tpu_custom_call.1
$region0: #{tpu_custom_call.1}
  #allocation0 [shape = 'u32[]', space=smem, size = 0x4, offset = 0x4, fixed_abs, tag = 'smem constant byte address 0x4 - core index']
  #allocation1 [shape = 'u32[72,128]{1,0:T(1,128)}', space=vmem, size = 0x9000, scoped, tag = 'internal scratch']
  %s0 = inlined_call_operand.hbm [shape: f32[2,32], index: 0, kind: input, shape index: {}]
  %s1 = inlined_call_operand.hbm [shape: f32[2,8,32], index: 1, kind: input, shape index: {}]
  %s2 = inlined_call_operand.hbm [shape: f32[32,32], index: 2, kind: input, shape index: {}]
  %s3 = inlined_call_operand.hbm [shape: f32[32,32], index: 3, kind: input, shape index: {}]
  %s4 = inlined_call_operand.vmem [shape: f32[1,32], index: 4, kind: input, shape index: {}]
  %s5 = inlined_call_operand.vmem [shape: f32[1,32], index: 5, kind: input, shape index: {}]
  %s6 = inlined_call_operand.hbm [shape: f32[2,32], index: 6, kind: output, shape index: {0}]
  %s7 = inlined_call_operand.hbm [shape: f32[2,8], index: 7, kind: output, shape index: {1}]
  %8 = xla_tuple %s6, %s7
  %s9 = sld [smem:[#allocation0]]
  $region58: #{tpu_custom_call.1} parent=0
    _
  %s11 = ssub.s32 1, %s9
  %s12 = scalar_select 0, %s11, %s9
  $region1: #{tpu_custom_call.1} parent=0
    #allocation2 [shape = 'u8[1024]{0}', space=vmem, size = 0x400, scoped, tag = 'input window, operand 0, single buffered']
    #allocation3 [shape = 's32[1]{0}', space=sflag, size = 0x4, scoped, tag = 'scoped memory for tpu_custom_call.1']
    #allocation4 [shape = 's32[1]{0}', space=sflag, size = 0x4, scoped, tag = 'scoped memory for tpu_custom_call.1']
    #allocation5 [shape = 'u8[8192]{0}', space=vmem, size = 0x2000, scoped, tag = 'input window, operand 1, single buffered']
    #allocation6 [shape = 's32[1]{0}', space=sflag, size = 0x4, scoped, tag = 'scoped memory for tpu_custom_call.1']
    #allocation7 [shape = 'u8[16384]{0}', space=vmem, size = 0x4000, scoped, tag = 'input window, operand 2, single buffered']
    #allocation8 [shape = 'u8[16384]{0}', space=vmem, size = 0x4000, scoped, tag = 'input window, operand 3, single buffered']
    #allocation9 [shape = 's32[1]{0}', space=sflag, size = 0x4, scoped, tag = 'scoped memory for tpu_custom_call.1']
    #allocation10 [shape = 'u8[1024]{0}', space=vmem, size = 0x400, scoped, tag = 'output window, operand 0, single buffered']
    #allocation11 [shape = 'u8[1024]{0}', space=vmem, size = 0x400, scoped, tag = 'output window, operand 1, single buffered']
    #allocation12 [shape = 's32[1]{0}', space=sflag, size = 0x4, scoped, tag = 'scoped memory for tpu_custom_call.1']
    %13 = vsyncpa [#allocation3], 0
    %14 = vsyncpa [#allocation6], 0
    %15 = vsyncpa [#allocation9], 0
    %16 = vsyncpa [#allocation4], 0
    %17 = vsyncpa [#allocation12], 0
    // Predicated region
    $region2: #{tpu_custom_call.1} parent=1 // pred_check
      _
    $region3: #{tpu_custom_call.1} parent=1 // pred_check_branch
      %19 = sbr.rel (0) target = $region5
    $region4: #{tpu_custom_call.1} parent=1 // pred_region
      %21 = vsyncadd [#allocation3], 0
      %s23 = sshll.u32 %s0, 4
      %s24 = int_to_ptr.hbm [resolvable:$true] %s23
      %s25 = sshll.u32 [#allocation2], 4
      %s26 = int_to_ptr.vmem [resolvable:$true] %s25
      %28 = dma.hbm_to_vmem [thread:$0]  %s24, 32, %s26, [#allocation3]
    $region5: #{tpu_custom_call.1} parent=1 // pred_fallthru
      _
    // Predicated region
    $region6: #{tpu_custom_call.1} parent=1 // pred_check
      _
    $region7: #{tpu_custom_call.1} parent=1 // pred_check_branch
      %30 = sbr.rel (0) target = $region9
    $region8: #{tpu_custom_call.1} parent=1 // pred_region
      %32 = vsyncadd [#allocation6], 0
      %s33 = sshll.u32 %s1, 4
      %s34 = int_to_ptr.hbm [resolvable:$true] %s33
      %s35 = sshll.u32 [#allocation5], 4
      %s36 = int_to_ptr.vmem [resolvable:$true] %s35
      %41 = dma.hbm_to_vmem [thread:$0]  %s34, 256, %s36, [#allocation6], 128, 128, 8
    $region9: #{tpu_custom_call.1} parent=1 // pred_fallthru
      _
    // Predicated region
    $region10: #{tpu_custom_call.1} parent=1 // pred_check
      _
    $region11: #{tpu_custom_call.1} parent=1 // pred_check_branch
      %43 = sbr.rel (0) target = $region13
    $region12: #{tpu_custom_call.1} parent=1 // pred_region
      %45 = vsyncadd [#allocation6], 0
      %s46 = sshll.u32 %s2, 4
      %s47 = int_to_ptr.hbm [resolvable:$true] %s46
      %s48 = sshll.u32 [#allocation7], 4
      %s49 = int_to_ptr.vmem [resolvable:$true] %s48
      %54 = dma.hbm_to_vmem [thread:$0]  %s47, 512, %s49, [#allocation6], 128, 128, 8
    $region13: #{tpu_custom_call.1} parent=1 // pred_fallthru
      _
    // Predicated region
    $region14: #{tpu_custom_call.1} parent=1 // pred_check
      _
    $region15: #{tpu_custom_call.1} parent=1 // pred_check_branch
      %56 = sbr.rel (0) target = $region17
    $region16: #{tpu_custom_call.1} parent=1 // pred_region
      %58 = vsyncadd [#allocation9], 0
      %s59 = sshll.u32 %s3, 4
      %s60 = int_to_ptr.hbm [resolvable:$true] %s59
      %s61 = sshll.u32 [#allocation8], 4
      %s62 = int_to_ptr.vmem [resolvable:$true] %s61
      %67 = dma.hbm_to_vmem [thread:$0]  %s60, 512, %s62, [#allocation9], 128, 128, 8
    $region17: #{tpu_custom_call.1} parent=1 // pred_fallthru
      _
    // Predicated region
    $region18: #{tpu_custom_call.1} parent=1 // pred_check
      _
    $region19: #{tpu_custom_call.1} parent=1 // pred_check_branch
      %69 = sbr.rel (0) target = $region21
    $region20: #{tpu_custom_call.1} parent=1 // pred_region
      _
    $region21: #{tpu_custom_call.1} parent=1 // pred_fallthru
      _
    // Predicated region
    $region22: #{tpu_custom_call.1} parent=1 // pred_check
      _
    $region23: #{tpu_custom_call.1} parent=1 // pred_check_branch
      %71 = sbr.rel (0) target = $region25
    $region24: #{tpu_custom_call.1} parent=1 // pred_region
      _
    $region25: #{tpu_custom_call.1} parent=1 // pred_fallthru
      _
    // Predicated region
    $region26: #{tpu_custom_call.1} parent=1 // pred_check
      _
    $region27: #{tpu_custom_call.1} parent=1 // pred_check_branch
      %73 = sbr.rel (0) target = $region29
    $region28: #{tpu_custom_call.1} parent=1 // pred_region
      %75 = dma.done [#allocation3], 32
    $region29: #{tpu_custom_call.1} parent=1 // pred_fallthru
      _
    // Predicated region
    $region30: #{tpu_custom_call.1} parent=1 // pred_check
      _
    $region31: #{tpu_custom_call.1} parent=1 // pred_check_branch
      %77 = sbr.rel (0) target = $region33
    $region32: #{tpu_custom_call.1} parent=1 // pred_region
      %79 = dma.done [#allocation6], 256
    $region33: #{tpu_custom_call.1} parent=1 // pred_fallthru
      _
    // Predicated region
    $region34: #{tpu_custom_call.1} parent=1 // pred_check
      _
    $region35: #{tpu_custom_call.1} parent=1 // pred_check_branch
      %81 = sbr.rel (0) target = $region37
    $region36: #{tpu_custom_call.1} parent=1 // pred_region
      %83 = dma.done [#allocation6], 512
    $region37: #{tpu_custom_call.1} parent=1 // pred_fallthru
      _
    // Predicated region
    $region38: #{tpu_custom_call.1} parent=1 // pred_check
      _
    $region39: #{tpu_custom_call.1} parent=1 // pred_check_branch
      %85 = sbr.rel (0) target = $region41
    $region40: #{tpu_custom_call.1} parent=1 // pred_region
      %87 = dma.done [#allocation9], 512
    $region41: #{tpu_custom_call.1} parent=1 // pred_fallthru
      _
    %v88 = vld [vmem:[#allocation5] sm:$0xff]
    %v89 = vld [vmem:[#allocation5 + $0x8] sm:$0xff]
    %v90 = vld [vmem:[#allocation2] sm:$0x3]
    %v91 = vld [vmem:[#allocation7] sm:$0xff]
    %v92 = vld [vmem:[#allocation7 + $0x8] sm:$0xff]
    %v93 = vld [vmem:[#allocation7 + $0x10] sm:$0xff]
    %v94 = vld [vmem:[#allocation7 + $0x18] sm:$0xff]
    %v95 = vld [vmem:[%s4] sm:$0x1]
    %v97 = vperm.slane %v95, 0
    %vm99 = vcmask 261120
    %v101 = vsel %vm99, %v90, 0
    %103 = vmatpush.msra.mxu0 0.0
    %104 = vmatpush.msra.mxu0 0.0
    %105 = vmatpush.msra.mxu0 0.0
    %106 = vmatpush.msra.mxu0 0.0
    %107 = vmatpush.msra.mxu0 0.0
    %108 = vmatpush.msra.mxu0 0.0
    %109 = vmatpush.msra.mxu0 0.0
    %110 = vmatpush.msra.mxu0 0.0
    %111 = vmatpush.msra.mxu0 0.0
    %112 = vmatpush.msra.mxu0 0.0
    %113 = vmatpush.msra.mxu0 0.0
    %114 = vmatpush.msra.mxu0 0.0
    %115 = vmatpush.msra.mxu0 %v94
    %116 = vmatpush.msra.mxu0 %v93
    %117 = vmatpush.msra.mxu0 %v92
    %118 = vmatpush.msra.mxu0 %v91
    %119 = vmatmul.f32.gmra.mxu0 %v101
    %v120 = vpop.f32.mrf.mxu0
    %v121 = vadd.f32 %v97, %v120
    %122 = vdwg.mxu0
    %v123 = vld [vmem:[#allocation8] sm:$0xff]
    %v124 = vld [vmem:[#allocation8 + $0x8] sm:$0xff]
    %v125 = vld [vmem:[#allocation8 + $0x10] sm:$0xff]
    %v126 = vld [vmem:[#allocation8 + $0x18] sm:$0xff]
    %v128 = vsel %vm99, %v88, 0
    %v131 = vsel %vm99, %v89, 0
    %133 = vmatpush.msra.mxu0 0.0
    %134 = vmatpush.msra.mxu0 0.0
    %135 = vmatpush.msra.mxu0 0.0
    %136 = vmatpush.msra.mxu0 0.0
    %137 = vmatpush.msra.mxu0 0.0
    %138 = vmatpush.msra.mxu0 0.0
    %139 = vmatpush.msra.mxu0 0.0
    %140 = vmatpush.msra.mxu0 0.0
    %141 = vmatpush.msra.mxu0 0.0
    %142 = vmatpush.msra.mxu0 0.0
    %143 = vmatpush.msra.mxu0 0.0
    %144 = vmatpush.msra.mxu0 0.0
    %145 = vmatpush.msra.mxu0 %v126
    %146 = vmatpush.msra.mxu0 %v125
    %147 = vmatpush.msra.mxu0 %v124
    %148 = vmatpush.msra.mxu0 %v123
    %149 = vmatmul.f32.gmra.mxu0 %v128
    %v150 = vpop.f32.mrf.mxu0
    %v151 = vadd.f32 0.0, %v150
    %152 = vmatmul.f32.gmra.mxu0 %v131
    %v153 = vpop.f32.mrf.mxu0
    %v154 = vadd.f32 0.0, %v153
    %155 = vdwg.mxu0
    %v157 = vrot.slane %v121, 1
    %v158 = vperm.slane %v121, 0
    %v159 = vperm.slane %v157, 0
    %v162 = vadd.f32 %v158, %v151
    %v163 = vadd.f32 %v159, %v154
    %v164 = vtanh.pop %v162
    %v165 = vtanh.pop %v163
    %v166 = vld [vmem:[%s5] sm:$0x1]
    %v168 = vperm.slane %v166, 0
    %v170 = vmul.f32 %v164, %v168
    %v171 = vmul.f32 %v165, %v168
    %v172 = vsel %vm99, %v170, 0.0
    %173 = vadd.xlane.f32.xlu0 %v172
    %v174 = vpop.xlane.xlu0 %173
    %v175 = vsel %vm99, %v171, 0.0
    %176 = vadd.xlane.f32.xlu0 %v175
    %v177 = vpop.xlane.xlu0 %176
    %v180 = vlaneseq
    %v181 = vand.u32 %v180, 127
    %v182 = vperm.slane %v174, %v181
    %v183 = vperm.slane %v177, %v181
    %vm184 = vcmask 1041409
    %v185 = vsel %vm184, %v183, %v182
    %vm187 = vcmask 58368
    %v188 = vsel %vm187, %v185, -inf
    %189 = vmax.xlane.f32.xlu0 %v188
    %v190 = vpop.xlane.xlu0 %189
    %v192 = vperm.slane %v190, 0
    %v193 = vperm.slane %v190, 1
    %v196 = vsub.f32 %v174, %v192
    %v197 = vsub.f32 %v177, %v193
    %v198 = vmul.f32 %v196, 1.442695
    %v199 = vpow.pop %v198
    %v200 = vmul.f32 %v197, 1.442695
    %v201 = vpow.pop %v200
    %204 = vset.pattern.permute.xlu0 0
    %205 = vperm.xlu0 %204, %v199
    %v206 = vpop.permute.xlu0 %205
    %207 = vset.pattern.permute.xlu0 0
    %208 = vperm.xlu0 %207, %v201
    %v209 = vpop.permute.xlu0 %208
    %v210 = vperm.slane %v206, %v181
    %v211 = vperm.slane %v209, %v181
    %v212 = vsel %vm184, %v211, %v210
    %v214 = vsel %vm187, %v212, 0.0
    %215 = vadd.xlane.f32.xlu0 %v214
    %v216 = vpop.xlane.xlu0 %215
    %v217 = vrcp.pop %v216
    %v219 = vperm.slane %v217, 0
    %v220 = vperm.slane %v217, 1
    %v223 = vmul.f32 %v199, %v219
    %v224 = vmul.f32 %v201, %v220
    %226 = vset.pattern.permute.xlu0 0
    %227 = vperm.xlu0 %226, %v223
    %v228 = vpop.permute.xlu0 %227
    %231 = vset.pattern.permute.xlu0 0
    %232 = vperm.xlu0 %231, %v224
    %v233 = vpop.permute.xlu0 %232
    %v235 = vmul.f32 %v228, %v88
    %v236 = vmul.f32 %v233, %v89
    %v237 = vsel %vm99, %v235, 0.0
    %v238 = vrot.slane %v237, 4
    %v239 = vadd.f32 %v237, %v238
    %v240 = vrot.slane %v239, 2
    %v241 = vadd.f32 %v239, %v240
    %v242 = vrot.slane %v241, 1
    %v243 = vadd.f32 %v241, %v242
    %v244 = vsel %vm99, %v236, 0.0
    %v245 = vrot.slane %v244, 4
    %v246 = vadd.f32 %v244, %v245
    %v247 = vrot.slane %v246, 2
    %v248 = vadd.f32 %v246, %v247
    %v249 = vrot.slane %v248, 1
    %v250 = vadd.f32 %v248, %v249
    %v253 = vsel %vm184, %v250, %v243
    %vm255 = vcmask 254976
    %256 = vst.msk [vmem:[#allocation10] sm:$0x3] %vm255, %v253
    %v257 = vperm.slane %v228, %v181
    %v258 = vperm.slane %v233, %v181
    %v259 = vsel %vm184, %v258, %v257
    %261 = vst.msk [vmem:[#allocation11] sm:$0x3] %vm187, %v259
    // Predicated region
    $region42: #{tpu_custom_call.1} parent=1 // pred_check
      _
    $region43: #{tpu_custom_call.1} parent=1 // pred_check_branch
      %263 = sbr.rel (0) target = $region45
    $region44: #{tpu_custom_call.1} parent=1 // pred_region
      %265 = vsyncadd [#allocation4], 0
      %s267 = sshll.u32 [#allocation10], 4
      %s268 = int_to_ptr.vmem [resolvable:$true] %s267
      %s269 = sshll.u32 %s6, 4
      %s270 = int_to_ptr.hbm [resolvable:$true] %s269
      %272 = dma.vmem_to_hbm [thread:$0]  %s268, 32, %s270, [#allocation4]
    $region45: #{tpu_custom_call.1} parent=1 // pred_fallthru
      _
    // Predicated region
    $region46: #{tpu_custom_call.1} parent=1 // pred_check
      _
    $region47: #{tpu_custom_call.1} parent=1 // pred_check_branch
      %274 = sbr.rel (0) target = $region49
    $region48: #{tpu_custom_call.1} parent=1 // pred_region
      %276 = vsyncadd [#allocation12], 0
      %s278 = sshll.u32 [#allocation11], 4
      %s279 = int_to_ptr.vmem [resolvable:$true] %s278
      %s280 = sshll.u32 %s7, 4
      %s281 = int_to_ptr.hbm [resolvable:$true] %s280
      %283 = dma.vmem_to_hbm [thread:$0]  %s279, 32, %s281, [#allocation12]
    $region49: #{tpu_custom_call.1} parent=1 // pred_fallthru
      _
    // Predicated region
    $region50: #{tpu_custom_call.1} parent=1 // pred_check
      _
    $region51: #{tpu_custom_call.1} parent=1 // pred_check_branch
      %285 = sbr.rel (0) target = $region53
    $region52: #{tpu_custom_call.1} parent=1 // pred_region
      %287 = dma.done [#allocation4], 32
    $region53: #{tpu_custom_call.1} parent=1 // pred_fallthru
      _
    // Predicated region
    $region54: #{tpu_custom_call.1} parent=1 // pred_check
      _
    $region55: #{tpu_custom_call.1} parent=1 // pred_check_branch
      %289 = sbr.rel (0) target = $region57
    $region56: #{tpu_custom_call.1} parent=1 // pred_region
      %291 = dma.done [#allocation12], 32
    $region57: #{tpu_custom_call.1} parent=1 // pred_fallthru
      _
    %292 = vsyncpa [#allocation3], 1
    %293 = vsyncpa [#allocation6], 1
    %294 = vsyncpa [#allocation9], 1
    %295 = vsyncpa [#allocation4], 1
    %296 = vsyncpa [#allocation12], 1

// kernel: tpu_custom_call.1
$region0: #{tpu_custom_call.1}
  #allocation0 [shape = 'u32[]', space=smem, size = 0x4, offset = 0x4, fixed_abs, tag = 'smem constant byte address 0x4 - core index']
  #allocation1 [shape = 'u32[72,128]{1,0:T(1,128)}', space=vmem, size = 0x9000, scoped, tag = 'internal scratch']
  %s0 = inlined_call_operand.hbm [shape: f32[2,32], index: 0, kind: input, shape index: {}]
  %s1 = inlined_call_operand.hbm [shape: f32[2,8,32], index: 1, kind: input, shape index: {}]
  %s2 = inlined_call_operand.hbm [shape: f32[32,32], index: 2, kind: input, shape index: {}]
  %s3 = inlined_call_operand.hbm [shape: f32[32,32], index: 3, kind: input, shape index: {}]
  %s4 = inlined_call_operand.vmem [shape: f32[1,32], index: 4, kind: input, shape index: {}]
  %s5 = inlined_call_operand.vmem [shape: f32[1,32], index: 5, kind: input, shape index: {}]
  %s6 = inlined_call_operand.hbm [shape: f32[2,32], index: 6, kind: output, shape index: {0}]
  %s7 = inlined_call_operand.hbm [shape: f32[2,8], index: 7, kind: output, shape index: {1}]
  %8 = xla_tuple %s6, %s7
  %s9 = sld [smem:[#allocation0]]
  $region58: #{tpu_custom_call.1} parent=0
    _
  %s11 = ssub.s32 1, %s9
  %s12 = scalar_select 0, %s11, %s9
  $region1: #{tpu_custom_call.1} parent=0
    #allocation2 [shape = 'u8[1024]{0}', space=vmem, size = 0x400, scoped, tag = 'input window, operand 0, single buffered']
    #allocation3 [shape = 's32[1]{0}', space=sflag, size = 0x4, scoped, tag = 'scoped memory for tpu_custom_call.1']
    #allocation4 [shape = 's32[1]{0}', space=sflag, size = 0x4, scoped, tag = 'scoped memory for tpu_custom_call.1']
    #allocation5 [shape = 'u8[8192]{0}', space=vmem, size = 0x2000, scoped, tag = 'input window, operand 1, single buffered']
    #allocation6 [shape = 's32[1]{0}', space=sflag, size = 0x4, scoped, tag = 'scoped memory for tpu_custom_call.1']
    #allocation7 [shape = 'u8[16384]{0}', space=vmem, size = 0x4000, scoped, tag = 'input window, operand 2, single buffered']
    #allocation8 [shape = 'u8[16384]{0}', space=vmem, size = 0x4000, scoped, tag = 'input window, operand 3, single buffered']
    #allocation9 [shape = 's32[1]{0}', space=sflag, size = 0x4, scoped, tag = 'scoped memory for tpu_custom_call.1']
    #allocation10 [shape = 'u8[1024]{0}', space=vmem, size = 0x400, scoped, tag = 'output window, operand 0, single buffered']
    #allocation11 [shape = 'u8[1024]{0}', space=vmem, size = 0x400, scoped, tag = 'output window, operand 1, single buffered']
    #allocation12 [shape = 's32[1]{0}', space=sflag, size = 0x4, scoped, tag = 'scoped memory for tpu_custom_call.1']
    %13 = vsyncpa [#allocation3], 0
    %14 = vsyncpa [#allocation6], 0
    %15 = vsyncpa [#allocation9], 0
    %16 = vsyncpa [#allocation4], 0
    %17 = vsyncpa [#allocation12], 0
    // Predicated region
    $region2: #{tpu_custom_call.1} parent=1 // pred_check
      _
    $region3: #{tpu_custom_call.1} parent=1 // pred_check_branch
      %19 = sbr.rel (0) target = $region5
    $region4: #{tpu_custom_call.1} parent=1 // pred_region
      %21 = vsyncadd [#allocation3], 0
      %s23 = sshll.u32 %s0, 4
      %s24 = int_to_ptr.hbm [resolvable:$true] %s23
      %s25 = sshll.u32 [#allocation2], 4
      %s26 = int_to_ptr.vmem [resolvable:$true] %s25
      %28 = dma.hbm_to_vmem [thread:$0]  %s24, 32, %s26, [#allocation3]
    $region5: #{tpu_custom_call.1} parent=1 // pred_fallthru
      _
    // Predicated region
    $region6: #{tpu_custom_call.1} parent=1 // pred_check
      _
    $region7: #{tpu_custom_call.1} parent=1 // pred_check_branch
      %30 = sbr.rel (0) target = $region9
    $region8: #{tpu_custom_call.1} parent=1 // pred_region
      %32 = vsyncadd [#allocation6], 0
      %s33 = sshll.u32 %s1, 4
      %s34 = int_to_ptr.hbm [resolvable:$true] %s33
      %s35 = sshll.u32 [#allocation5], 4
      %s36 = int_to_ptr.vmem [resolvable:$true] %s35
      %41 = dma.hbm_to_vmem [thread:$0]  %s34, 256, %s36, [#allocation6], 128, 128, 8
    $region9: #{tpu_custom_call.1} parent=1 // pred_fallthru
      _
    // Predicated region
    $region10: #{tpu_custom_call.1} parent=1 // pred_check
      _
    $region11: #{tpu_custom_call.1} parent=1 // pred_check_branch
      %43 = sbr.rel (0) target = $region13
    $region12: #{tpu_custom_call.1} parent=1 // pred_region
      %45 = vsyncadd [#allocation6], 0
      %s46 = sshll.u32 %s2, 4
      %s47 = int_to_ptr.hbm [resolvable:$true] %s46
      %s48 = sshll.u32 [#allocation7], 4
      %s49 = int_to_ptr.vmem [resolvable:$true] %s48
      %54 = dma.hbm_to_vmem [thread:$0]  %s47, 512, %s49, [#allocation6], 128, 128, 8
    $region13: #{tpu_custom_call.1} parent=1 // pred_fallthru
      _
    // Predicated region
    $region14: #{tpu_custom_call.1} parent=1 // pred_check
      _
    $region15: #{tpu_custom_call.1} parent=1 // pred_check_branch
      %56 = sbr.rel (0) target = $region17
    $region16: #{tpu_custom_call.1} parent=1 // pred_region
      %58 = vsyncadd [#allocation9], 0
      %s59 = sshll.u32 %s3, 4
      %s60 = int_to_ptr.hbm [resolvable:$true] %s59
      %s61 = sshll.u32 [#allocation8], 4
      %s62 = int_to_ptr.vmem [resolvable:$true] %s61
      %67 = dma.hbm_to_vmem [thread:$0]  %s60, 512, %s62, [#allocation9], 128, 128, 8
    $region17: #{tpu_custom_call.1} parent=1 // pred_fallthru
      _
    // Predicated region
    $region18: #{tpu_custom_call.1} parent=1 // pred_check
      _
    $region19: #{tpu_custom_call.1} parent=1 // pred_check_branch
      %69 = sbr.rel (0) target = $region21
    $region20: #{tpu_custom_call.1} parent=1 // pred_region
      _
    $region21: #{tpu_custom_call.1} parent=1 // pred_fallthru
      _
    // Predicated region
    $region22: #{tpu_custom_call.1} parent=1 // pred_check
      _
    $region23: #{tpu_custom_call.1} parent=1 // pred_check_branch
      %71 = sbr.rel (0) target = $region25
    $region24: #{tpu_custom_call.1} parent=1 // pred_region
      _
    $region25: #{tpu_custom_call.1} parent=1 // pred_fallthru
      _
    // Predicated region
    $region26: #{tpu_custom_call.1} parent=1 // pred_check
      _
    $region27: #{tpu_custom_call.1} parent=1 // pred_check_branch
      %73 = sbr.rel (0) target = $region29
    $region28: #{tpu_custom_call.1} parent=1 // pred_region
      %75 = dma.done [#allocation3], 32
    $region29: #{tpu_custom_call.1} parent=1 // pred_fallthru
      _
    // Predicated region
    $region30: #{tpu_custom_call.1} parent=1 // pred_check
      _
    $region31: #{tpu_custom_call.1} parent=1 // pred_check_branch
      %77 = sbr.rel (0) target = $region33
    $region32: #{tpu_custom_call.1} parent=1 // pred_region
      %79 = dma.done [#allocation6], 256
    $region33: #{tpu_custom_call.1} parent=1 // pred_fallthru
      _
    // Predicated region
    $region34: #{tpu_custom_call.1} parent=1 // pred_check
      _
    $region35: #{tpu_custom_call.1} parent=1 // pred_check_branch
      %81 = sbr.rel (0) target = $region37
    $region36: #{tpu_custom_call.1} parent=1 // pred_region
      %83 = dma.done [#allocation6], 512
    $region37: #{tpu_custom_call.1} parent=1 // pred_fallthru
      _
    // Predicated region
    $region38: #{tpu_custom_call.1} parent=1 // pred_check
      _
    $region39: #{tpu_custom_call.1} parent=1 // pred_check_branch
      %85 = sbr.rel (0) target = $region41
    $region40: #{tpu_custom_call.1} parent=1 // pred_region
      %87 = dma.done [#allocation9], 512
    $region41: #{tpu_custom_call.1} parent=1 // pred_fallthru
      _
    %v88 = vld [vmem:[#allocation5] sm:$0xff]
    %v89 = vld [vmem:[#allocation5 + $0x8] sm:$0xff]
    %v90 = vld [vmem:[#allocation2] sm:$0x3]
    %v91 = vld [vmem:[#allocation7] sm:$0xff]
    %v92 = vld [vmem:[#allocation7 + $0x8] sm:$0xff]
    %v93 = vld [vmem:[#allocation7 + $0x10] sm:$0xff]
    %v94 = vld [vmem:[#allocation7 + $0x18] sm:$0xff]
    %v95 = vld [vmem:[%s4] sm:$0x1]
    %v97 = vperm.slane %v95, 0
    %vm99 = vcmask 261120
    %v101 = vsel %vm99, %v90, 0
    %103 = vmatpush.msra.mxu0 0.0
    %104 = vmatpush.msra.mxu0 0.0
    %105 = vmatpush.msra.mxu0 0.0
    %106 = vmatpush.msra.mxu0 0.0
    %107 = vmatpush.msra.mxu0 0.0
    %108 = vmatpush.msra.mxu0 0.0
    %109 = vmatpush.msra.mxu0 0.0
    %110 = vmatpush.msra.mxu0 0.0
    %111 = vmatpush.msra.mxu0 0.0
    %112 = vmatpush.msra.mxu0 0.0
    %113 = vmatpush.msra.mxu0 0.0
    %114 = vmatpush.msra.mxu0 0.0
    %115 = vmatpush.msra.mxu0 %v94
    %116 = vmatpush.msra.mxu0 %v93
    %117 = vmatpush.msra.mxu0 %v92
    %118 = vmatpush.msra.mxu0 %v91
    %119 = vmatmul.f32.gmra.mxu0 %v101
    %v120 = vpop.f32.mrf.mxu0
    %v121 = vadd.f32 %v97, %v120
    %122 = vdwg.mxu0
    %v123 = vld [vmem:[#allocation8] sm:$0xff]
    %v124 = vld [vmem:[#allocation8 + $0x8] sm:$0xff]
    %v125 = vld [vmem:[#allocation8 + $0x10] sm:$0xff]
    %v126 = vld [vmem:[#allocation8 + $0x18] sm:$0xff]
    %v128 = vsel %vm99, %v88, 0
    %v131 = vsel %vm99, %v89, 0
    %133 = vmatpush.msra.mxu0 0.0
    %134 = vmatpush.msra.mxu0 0.0
    %135 = vmatpush.msra.mxu0 0.0
    %136 = vmatpush.msra.mxu0 0.0
    %137 = vmatpush.msra.mxu0 0.0
    %138 = vmatpush.msra.mxu0 0.0
    %139 = vmatpush.msra.mxu0 0.0
    %140 = vmatpush.msra.mxu0 0.0
    %141 = vmatpush.msra.mxu0 0.0
    %142 = vmatpush.msra.mxu0 0.0
    %143 = vmatpush.msra.mxu0 0.0
    %144 = vmatpush.msra.mxu0 0.0
    %145 = vmatpush.msra.mxu0 %v126
    %146 = vmatpush.msra.mxu0 %v125
    %147 = vmatpush.msra.mxu0 %v124
    %148 = vmatpush.msra.mxu0 %v123
    %149 = vmatmul.f32.gmra.mxu0 %v128
    %v150 = vpop.f32.mrf.mxu0
    %v151 = vadd.f32 0.0, %v150
    %152 = vmatmul.f32.gmra.mxu0 %v131
    %v153 = vpop.f32.mrf.mxu0
    %v154 = vadd.f32 0.0, %v153
    %155 = vdwg.mxu0
    %v157 = vrot.slane %v121, 1
    %v158 = vperm.slane %v121, 0
    %v159 = vperm.slane %v157, 0
    %v162 = vadd.f32 %v158, %v151
    %v163 = vadd.f32 %v159, %v154
    %v164 = vtanh.pop %v162
    %v165 = vtanh.pop %v163
    %v166 = vld [vmem:[%s5] sm:$0x1]
    %v168 = vperm.slane %v166, 0
    %v170 = vmul.f32 %v164, %v168
    %v171 = vmul.f32 %v165, %v168
    %v172 = vsel %vm99, %v170, 0.0
    %173 = vadd.xlane.f32.xlu0 %v172
    %v174 = vpop.xlane.xlu0 %173
    %v175 = vsel %vm99, %v171, 0.0
    %176 = vadd.xlane.f32.xlu0 %v175
    %v177 = vpop.xlane.xlu0 %176
    %v180 = vlaneseq
    %v181 = vand.u32 %v180, 127
    %v182 = vperm.slane %v174, %v181
    %v183 = vperm.slane %v177, %v181
    %vm184 = vcmask 1041409
    %v185 = vsel %vm184, %v183, %v182
    %vm187 = vcmask 58368
    %v188 = vsel %vm187, %v185, -inf
    %189 = vmax.xlane.f32.xlu0 %v188
    %v190 = vpop.xlane.xlu0 %189
    %v192 = vperm.slane %v190, 0
    %v193 = vperm.slane %v190, 1
    %v196 = vsub.f32 %v174, %v192
    %v197 = vsub.f32 %v177, %v193
    %v198 = vmul.f32 %v196, 1.442695
    %v199 = vpow.pop %v198
    %v200 = vmul.f32 %v197, 1.442695
    %v201 = vpow.pop %v200
    %204 = vset.pattern.permute.xlu0 0
    %205 = vperm.xlu0 %204, %v199
    %v206 = vpop.permute.xlu0 %205
    %207 = vset.pattern.permute.xlu0 0
    %208 = vperm.xlu0 %207, %v201
    %v209 = vpop.permute.xlu0 %208
    %v210 = vperm.slane %v206, %v181
    %v211 = vperm.slane %v209, %v181
    %v212 = vsel %vm184, %v211, %v210
    %v214 = vsel %vm187, %v212, 0.0
    %215 = vadd.xlane.f32.xlu0 %v214
    %v216 = vpop.xlane.xlu0 %215
    %v217 = vrcp.pop %v216
    %v219 = vperm.slane %v217, 0
    %v220 = vperm.slane %v217, 1
    %v223 = vmul.f32 %v199, %v219
    %v224 = vmul.f32 %v201, %v220
    %226 = vset.pattern.permute.xlu0 0
    %227 = vperm.xlu0 %226, %v223
    %v228 = vpop.permute.xlu0 %227
    %231 = vset.pattern.permute.xlu0 0
    %232 = vperm.xlu0 %231, %v224
    %v233 = vpop.permute.xlu0 %232
    %v235 = vmul.f32 %v228, %v88
    %v236 = vmul.f32 %v233, %v89
    %v237 = vsel %vm99, %v235, 0.0
    %v238 = vrot.slane %v237, 4
    %v239 = vadd.f32 %v237, %v238
    %v240 = vrot.slane %v239, 2
    %v241 = vadd.f32 %v239, %v240
    %v242 = vrot.slane %v241, 1
    %v243 = vadd.f32 %v241, %v242
    %v244 = vsel %vm99, %v236, 0.0
    %v245 = vrot.slane %v244, 4
    %v246 = vadd.f32 %v244, %v245
    %v247 = vrot.slane %v246, 2
    %v248 = vadd.f32 %v246, %v247
    %v249 = vrot.slane %v248, 1
    %v250 = vadd.f32 %v248, %v249
    %v253 = vsel %vm184, %v250, %v243
    %vm255 = vcmask 254976
    %256 = vst.msk [vmem:[#allocation10] sm:$0x3] %vm255, %v253
    %v257 = vperm.slane %v228, %v181
    %v258 = vperm.slane %v233, %v181
    %v259 = vsel %vm184, %v258, %v257
    %261 = vst.msk [vmem:[#allocation11] sm:$0x3] %vm187, %v259
    // Predicated region
    $region42: #{tpu_custom_call.1} parent=1 // pred_check
      _
    $region43: #{tpu_custom_call.1} parent=1 // pred_check_branch
      %263 = sbr.rel (0) target = $region45
    $region44: #{tpu_custom_call.1} parent=1 // pred_region
      %265 = vsyncadd [#allocation4], 0
      %s267 = sshll.u32 [#allocation10], 4
      %s268 = int_to_ptr.vmem [resolvable:$true] %s267
      %s269 = sshll.u32 %s6, 4
      %s270 = int_to_ptr.hbm [resolvable:$true] %s269
      %272 = dma.vmem_to_hbm [thread:$0]  %s268, 32, %s270, [#allocation4]
    $region45: #{tpu_custom_call.1} parent=1 // pred_fallthru
      _
    // Predicated region
    $region46: #{tpu_custom_call.1} parent=1 // pred_check
      _
    $region47: #{tpu_custom_call.1} parent=1 // pred_check_branch
      %274 = sbr.rel (0) target = $region49
    $region48: #{tpu_custom_call.1} parent=1 // pred_region
      %276 = vsyncadd [#allocation12], 0
      %s278 = sshll.u32 [#allocation11], 4
      %s279 = int_to_ptr.vmem [resolvable:$true] %s278
      %s280 = sshll.u32 %s7, 4
      %s281 = int_to_ptr.hbm [resolvable:$true] %s280
      %283 = dma.vmem_to_hbm [thread:$0]  %s279, 32, %s281, [#allocation12]
    $region49: #{tpu_custom_call.1} parent=1 // pred_fallthru
      _
    // Predicated region
    $region50: #{tpu_custom_call.1} parent=1 // pred_check
      _
    $region51: #{tpu_custom_call.1} parent=1 // pred_check_branch
      %285 = sbr.rel (0) target = $region53
    $region52: #{tpu_custom_call.1} parent=1 // pred_region
      %287 = dma.done [#allocation4], 32
    $region53: #{tpu_custom_call.1} parent=1 // pred_fallthru
      _
    // Predicated region
    $region54: #{tpu_custom_call.1} parent=1 // pred_check
      _
    $region55: #{tpu_custom_call.1} parent=1 // pred_check_branch
      %289 = sbr.rel (0) target = $region57
    $region56: #{tpu_custom_call.1} parent=1 // pred_region
      %291 = dma.done [#allocation12], 32
    $region57: #{tpu_custom_call.1} parent=1 // pred_fallthru
      _
    %292 = vsyncpa [#allocation3], 1
    %293 = vsyncpa [#allocation6], 1
    %294 = vsyncpa [#allocation9], 1
    %295 = vsyncpa [#allocation4], 1
    %296 = vsyncpa [#allocation12], 1

</llo_original>
